<compile_context>
chip_gen: v7x
topology: tpu7x:2x2x1
jax: 0.10.0
libtpu: 0.0.40
codegen_flags: <defaults>
</compile_context>

<pallas_src>
import functools

import jax
import jax.numpy as jnp
from jax.experimental import pallas as pl
from jax.experimental.pallas import tpu as pltpu


_LANE = 128      # lane width (last dim)
_SUBLANE = 8     # sublane count (second-to-last dim)


def _round_up(x, m):
    return (x + m - 1) // m * m


# ----------------------------- Pallas kernels -----------------------------

def _fused_mlp_kernel(x_ref, hw_ref, ow_ref, b_ref, o_ref, h_ref):
    """One grid step = one hidden layer of one batch tile.

    Grid = (batch_tiles [parallel], n_hidden [arbitrary]).

    x_ref : (TB, Dp)      padded input batch tile (read only at layer 0)
    hw_ref: (1, Dp, Dp)   current layer's zero-padded hidden weight, (in, out)
    ow_ref: (Dp, Dop)     zero-padded output weight, (in, out)
    b_ref : (1, Dop)      zero-padded bias
    o_ref : (TB, Dop)     padded output tile (written only on the last layer)
    h_ref : (TB, Dp) f32  VMEM scratch: running activation, persists across l
    """
    l = pl.program_id(1)
    n_hidden = pl.num_programs(1)

    @pl.when(l == 0)
    def _():
        # First hidden layer reads x directly (no copy into the scratch).
        h_ref[...] = jnp.tanh(
            jnp.dot(x_ref[...].astype(jnp.float32), hw_ref[0],
                    preferred_element_type=jnp.float32))

    @pl.when(l > 0)
    def _():
        # tanh(0) = 0, so zero-padded lanes remain zero layer-to-layer.
        h_ref[...] = jnp.tanh(
            jnp.dot(h_ref[...], hw_ref[0],
                    preferred_element_type=jnp.float32))

    @pl.when(l == n_hidden - 1)
    def _():
        acc = jnp.dot(h_ref[...], ow_ref[...],
                      preferred_element_type=jnp.float32)
        o_ref[...] = (acc + b_ref[...]).astype(o_ref.dtype)


def _linear_bias_kernel(x_ref, ow_ref, b_ref, o_ref):
    """Degenerate n_lls == 1 case: a single biased linear layer."""
    acc = jnp.dot(x_ref[...].astype(jnp.float32), ow_ref[...],
                  preferred_element_type=jnp.float32)
    o_ref[...] = (acc + b_ref[...]).astype(o_ref.dtype)


# ----------------------------- helpers -------------------------------------

def _vmem_limit_bytes(*buffer_bytes):
    """Explicit scoped-VMEM limit: need + headroom, never below the default."""
    need = sum(int(b) for b in buffer_bytes)
    limit = max(need * 5 // 4 + (2 << 20), 32 << 20)
    # Cap well under the smallest physical VMEM we target (v7x: 64 MiB / TC).
    return int(min(limit, 100 << 20))


def _choose_tile_b(B):
    """Batch tile: MXU-friendly, low padding, >=2 tiles for moderate batches."""
    Bp8 = _round_up(B, _SUBLANE)
    if Bp8 <= 256:
        return Bp8                       # tiny batch: one tile, no extra pad
    if Bp8 <= 1024:
        # Two tiles so dual-TensorCore chips can split the "parallel" axis.
        return _round_up((Bp8 + 1) // 2, _SUBLANE)
    # Large batch: biggest MXU-aligned tile that keeps padding under ~10%.
    for t in (512, 384, 256, 128, 64, 32, 16, 8):
        if (_round_up(B, t) - B) * 10 <= B:
            return t
    return _SUBLANE


# ----------------------------- wrappers ------------------------------------

def _fused_mlp(xp, hw, ow, b2d, *, tile_b):
    Bp, Dp = xp.shape
    Dop = ow.shape[1]
    n_hidden = hw.shape[0]
    vmem = _vmem_limit_bytes(
        2 * tile_b * Dp * 4,     # x double buffer
        2 * tile_b * Dop * 4,    # out double buffer
        tile_b * Dp * 4,         # activation scratch
        2 * Dp * Dp * 4,         # streamed hidden-weight double buffer
        2 * Dp * Dop * 4,        # output weight
        2 * Dop * 4)             # bias
    return pl.pallas_call(
        _fused_mlp_kernel,
        out_shape=jax.ShapeDtypeStruct((Bp, Dop), xp.dtype),
        grid=(Bp // tile_b, n_hidden),
        in_specs=[
            pl.BlockSpec((tile_b, Dp), lambda i, l: (i, 0)),
            pl.BlockSpec((1, Dp, Dp), lambda i, l: (l, 0, 0)),   # per-layer stream
            pl.BlockSpec((Dp, Dop), lambda i, l: (0, 0)),
            pl.BlockSpec((1, Dop), lambda i, l: (0, 0)),
        ],
        out_specs=pl.BlockSpec((tile_b, Dop), lambda i, l: (i, 0)),
        scratch_shapes=[pltpu.VMEM((tile_b, Dp), jnp.float32)],
        compiler_params=pltpu.CompilerParams(
            dimension_semantics=("parallel", "arbitrary"),
            vmem_limit_bytes=vmem),
    )(xp, hw, ow, b2d)


def _single_linear(xp, ow, b2d, *, tile_b):
    Bp, Dp = xp.shape
    Dop = ow.shape[1]
    vmem = _vmem_limit_bytes(
        2 * tile_b * Dp * 4, 2 * tile_b * Dop * 4,
        2 * Dp * Dop * 4, 2 * Dop * 4)
    return pl.pallas_call(
        _linear_bias_kernel,
        out_shape=jax.ShapeDtypeStruct((Bp, Dop), xp.dtype),
        grid=(Bp // tile_b,),
        in_specs=[
            pl.BlockSpec((tile_b, Dp), lambda i: (i, 0)),
            pl.BlockSpec((Dp, Dop), lambda i: (0, 0)),
            pl.BlockSpec((1, Dop), lambda i: (0, 0)),
        ],
        out_specs=pl.BlockSpec((tile_b, Dop), lambda i: (i, 0)),
        compiler_params=pltpu.CompilerParams(
            dimension_semantics=("parallel",),
            vmem_limit_bytes=vmem),
    )(xp, ow, b2d)


# ----------------------------- DL module -----------------------------------

def init_dl_params(key, input_size, output_size, n_lls=1, dtype=jnp.float32):
    """Deterministic init mirroring the PyTorch DL layer structure.

    Weights are stored as (in, out) (so y = x @ W (+ b), matching PyTorch's
    y = x @ W_pt.T + b) and zero-padded to lane-dense multiples of 128 at
    init time.  Unpadded copies are kept for the pure-JAX reference.
    """
    Dp = _round_up(input_size, _LANE)
    Dop = _round_up(output_size, _LANE)
    n_hidden = n_lls - 1
    bound = 1.0 / float(input_size) ** 0.5

    hidden_raw = []
    for _ in range(n_hidden):
        key, sub = jax.random.split(key)
        w = jax.random.uniform(sub, (input_size, input_size),
                               dtype=dtype, minval=-bound, maxval=bound)
        hidden_raw.append(w)

    key, kw, kb = jax.random.split(key, 3)
    ow_raw = jax.random.uniform(kw, (input_size, output_size),
                                dtype=dtype, minval=-bound, maxval=bound)
    b_raw = jax.random.uniform(kb, (output_size,),
                               dtype=dtype, minval=-bound, maxval=bound)

    if n_hidden > 0:
        hw = jnp.zeros((n_hidden, Dp, Dp), dtype)
        for l, w in enumerate(hidden_raw):
            hw = hw.at[l, :input_size, :input_size].set(w)
    else:
        hw = None

    ow = jnp.zeros((Dp, Dop), dtype).at[:input_size, :output_size].set(ow_raw)
    b = jnp.zeros((1, Dop), dtype).at[0, :output_size].set(b_raw)

    return {
        "hw": hw, "ow": ow, "b": b,                 # padded, used by kernel
        "hw_raw": hidden_raw, "ow_raw": ow_raw, "b_raw": b_raw,  # reference
    }


@functools.partial(jax.jit, static_argnames=("out_features",))
def dl_forward(params, x, *, out_features):
    B, Din = x.shape
    Dp = params["ow"].shape[0]
    assert Din <= Dp

    tile_b = _choose_tile_b(B)
    Bp = _round_up(B, tile_b)

    # Skip the padding copy entirely when no padding is needed (saves a full
    # HBM write+read of the input).
    # TODO(synk): for Din << Dp one could keep the first layer's contraction
    #             dim unpadded (f32 only needs K % 8 == 0) to cut DMA traffic.
    if Bp == B and Dp == Din:
        xp = x
    else:
        xp = jnp.zeros((Bp, Dp), x.dtype).at[:B, :Din].set(x)

    if params["hw"] is None:
        out_p = _single_linear(xp, params["ow"], params["b"], tile_b=tile_b)
    else:
        out_p = _fused_mlp(xp, params["hw"], params["ow"], params["b"],
                           tile_b=tile_b)
    return out_p[:B, :out_features]


def dl_forward_ref(params, x):
    h = x
    for w in params["hw_raw"]:
        h = jnp.tanh(h @ w)
    return h @ params["ow_raw"] + params["b_raw"]


# ----------------------------- main -----------------------------------------

if __name__ == "__main__":
    input_size = 32
    output_size = 16

    key = jax.random.PRNGKey(0)
    kp1, kp2, kx1, kx2 = jax.random.split(key, 4)

    # n_lls = 3: two hidden (linear + tanh) layers + final biased linear.
    batch = 8
    x = jax.random.normal(kx1, (batch, input_size), dtype=jnp.float32)
    params3 = init_dl_params(kp1, input_size, output_size, n_lls=3)
    out3 = jax.block_until_ready(dl_forward(params3, x,
                                            out_features=output_size))
    ref3 = dl_forward_ref(params3, x)
    assert out3.shape == (batch, output_size)
    assert jnp.allclose(out3, ref3, atol=1e-5, rtol=1e-5), "mismatch (n_lls=3)"

    # Same params, non-multiple-of-8 batch to exercise batch padding.
    batch_odd = 10
    x_odd = jax.random.normal(kx2, (batch_odd, input_size), dtype=jnp.float32)
    out3o = jax.block_until_ready(dl_forward(params3, x_odd,
                                             out_features=output_size))
    ref3o = dl_forward_ref(params3, x_odd)
    assert out3o.shape == (batch_odd, output_size)
    assert jnp.allclose(out3o, ref3o, atol=1e-5, rtol=1e-5), "mismatch (pad)"

    # n_lls = 1 (PyTorch default): single biased linear layer.
    params1 = init_dl_params(kp2, input_size, output_size, n_lls=1)
    out1 = jax.block_until_ready(dl_forward(params1, x,
                                            out_features=output_size))
    ref1 = dl_forward_ref(params1, x)
    assert out1.shape == (batch, output_size)
    assert jnp.allclose(out1, ref1, atol=1e-5, rtol=1e-5), "mismatch (n_lls=1)"

    print("KERNEL_OK")
</pallas_src>

<mosaic_0001>
module attributes {stable_mosaic.version = 11 : i64} {
  func.func @_fused_mlp_kernel(%arg0: i32, %arg1: i32, %arg2: memref<8x128xf32, #tpu.memory_space<vmem>>, %arg3: memref<1x128x128xf32, #tpu.memory_space<vmem>>, %arg4: memref<128x128xf32, #tpu.memory_space<vmem>>, %arg5: memref<1x128xf32, #tpu.memory_space<vmem>>, %arg6: memref<8x128xf32, #tpu.memory_space<vmem>>, %arg7: memref<8x128xf32, #tpu.memory_space<vmem>>) attributes {dimension_semantics = [#tpu.dimension_semantics<parallel>, #tpu.dimension_semantics<arbitrary>], iteration_bounds = array<i64: 1, 2>, scalar_prefetch = 0 : i64, scratch_operands = 1 : i64, tpu.core_type = #tpu.core_type<tc>, window_params = [{transform_indices = @transform_0, window_bounds = array<i64: 8, 128>}, {transform_indices = @transform_1, window_bounds = array<i64: 1, 128, 128>}, {pipeline_mode = #tpu.pipeline_mode<synchronous>, transform_indices = @transform_2, window_bounds = array<i64: 128, 128>}, {pipeline_mode = #tpu.pipeline_mode<synchronous>, transform_indices = @transform_3, window_bounds = array<i64: 1, 128>}, {transform_indices = @transform_4, window_bounds = array<i64: 8, 128>}]} {
    %c0_i32 = arith.constant 0 : i32
    %0 = arith.cmpi eq, %arg1, %c0_i32 : i32
    %1 = arith.extui %0 : i1 to i32
    %c0_i32_0 = arith.constant 0 : i32
    %2 = arith.cmpi ne, %1, %c0_i32_0 : i32
    scf.if %2 {
      %c0 = arith.constant 0 : index
      %c0_4 = arith.constant 0 : index
      %9 = vector.load %arg2[%c0, %c0_4] : memref<8x128xf32, #tpu.memory_space<vmem>>, vector<8x128xf32>
      %c0_5 = arith.constant 0 : index
      %c0_6 = arith.constant 0 : index
      %c0_7 = arith.constant 0 : index
      %10 = vector.load %arg3[%c0_5, %c0_6, %c0_7] : memref<1x128x128xf32, #tpu.memory_space<vmem>>, vector<1x128x128xf32>
      %11 = vector.shape_cast %10 : vector<1x128x128xf32> to vector<128x128xf32>
      %cst = arith.constant dense<0.000000e+00> : vector<8x128xf32>
      %12 = tpu.matmul %9, %11, %cst {dimension_numbers = #tpu.dot_dimension_numbers<[1], [0], [0], [1], [0, 0, 1, 1], [], []>} : vector<8x128xf32>, vector<128x128xf32>, vector<8x128xf32> -> vector<8x128xf32>
      %13 = math.tanh %12 : vector<8x128xf32>
      %c0_8 = arith.constant 0 : index
      %c0_9 = arith.constant 0 : index
      %14 = vector.load %arg7[%c0_8, %c0_9] : memref<8x128xf32, #tpu.memory_space<vmem>>, vector<8x128xf32>
      tpu.vector_store %arg7[%c0_8, %c0_9], %13 {strides = array<i32>} : memref<8x128xf32, #tpu.memory_space<vmem>>, vector<8x128xf32>,
    } else {
    }
    %c0_i32_1 = arith.constant 0 : i32
    %3 = arith.cmpi sgt, %arg1, %c0_i32_1 : i32
    %4 = arith.extui %3 : i1 to i32
    %c0_i32_2 = arith.constant 0 : i32
    %5 = arith.cmpi ne, %4, %c0_i32_2 : i32
    scf.if %5 {
      %c0 = arith.constant 0 : index
      %c0_4 = arith.constant 0 : index
      %9 = vector.load %arg7[%c0, %c0_4] : memref<8x128xf32, #tpu.memory_space<vmem>>, vector<8x128xf32>
      %c0_5 = arith.constant 0 : index
      %c0_6 = arith.constant 0 : index
      %c0_7 = arith.constant 0 : index
      %10 = vector.load %arg3[%c0_5, %c0_6, %c0_7] : memref<1x128x128xf32, #tpu.memory_space<vmem>>, vector<1x128x128xf32>
      %11 = vector.shape_cast %10 : vector<1x128x128xf32> to vector<128x128xf32>
      %cst = arith.constant dense<0.000000e+00> : vector<8x128xf32>
      %12 = tpu.matmul %9, %11, %cst {dimension_numbers = #tpu.dot_dimension_numbers<[1], [0], [0], [1], [0, 0, 1, 1], [], []>} : vector<8x128xf32>, vector<128x128xf32>, vector<8x128xf32> -> vector<8x128xf32>
      %13 = math.tanh %12 : vector<8x128xf32>
      %c0_8 = arith.constant 0 : index
      %c0_9 = arith.constant 0 : index
      %14 = vector.load %arg7[%c0_8, %c0_9] : memref<8x128xf32, #tpu.memory_space<vmem>>, vector<8x128xf32>
      tpu.vector_store %arg7[%c0_8, %c0_9], %13 {strides = array<i32>} : memref<8x128xf32, #tpu.memory_space<vmem>>, vector<8x128xf32>,
    } else {
    }
    %c1_i32 = arith.constant 1 : i32
    %6 = arith.cmpi eq, %arg1, %c1_i32 : i32
    %7 = arith.extui %6 : i1 to i32
    %c0_i32_3 = arith.constant 0 : i32
    %8 = arith.cmpi ne, %7, %c0_i32_3 : i32
    scf.if %8 {
      %c0 = arith.constant 0 : index
      %c0_4 = arith.constant 0 : index
      %9 = vector.load %arg7[%c0, %c0_4] : memref<8x128xf32, #tpu.memory_space<vmem>>, vector<8x128xf32>
      %c0_5 = arith.constant 0 : index
      %c0_6 = arith.constant 0 : index
      %10 = vector.load %arg4[%c0_5, %c0_6] : memref<128x128xf32, #tpu.memory_space<vmem>>, vector<128x128xf32>
      %cst = arith.constant dense<0.000000e+00> : vector<8x128xf32>
      %11 = tpu.matmul %9, %10, %cst {dimension_numbers = #tpu.dot_dimension_numbers<[1], [0], [0], [1], [0, 0, 1, 1], [], []>} : vector<8x128xf32>, vector<128x128xf32>, vector<8x128xf32> -> vector<8x128xf32>
      %c0_7 = arith.constant 0 : index
      %c0_8 = arith.constant 0 : index
      %12 = vector.load %arg5[%c0_7, %c0_8] : memref<1x128xf32, #tpu.memory_space<vmem>>, vector<1x128xf32>
      %13 = vector.broadcast %12 : vector<1x128xf32> to vector<8x128xf32>
      %14 = arith.addf %11, %13 : vector<8x128xf32>
      %c0_9 = arith.constant 0 : index
      %c0_10 = arith.constant 0 : index
      %15 = vector.load %arg6[%c0_9, %c0_10] : memref<8x128xf32, #tpu.memory_space<vmem>>, vector<8x128xf32>
      tpu.vector_store %arg6[%c0_9, %c0_10], %14 {strides = array<i32>} : memref<8x128xf32, #tpu.memory_space<vmem>>, vector<8x128xf32>,
    } else {
    }
    return
  }
  func.func @transform_0(%arg0: i32, %arg1: i32) -> (i32, i32) {
    %c0_i32 = arith.constant 0 : i32
    %c0_i32_0 = arith.constant 0 : i32
    return %arg0, %c0_i32 : i32, i32
  }
  func.func @transform_1(%arg0: i32, %arg1: i32) -> (i32, i32, i32) {
    %c0_i32 = arith.constant 0 : i32
    %c0_i32_0 = arith.constant 0 : i32
    %c0_i32_1 = arith.constant 0 : i32
    return %arg1, %c0_i32, %c0_i32_0 : i32, i32, i32
  }
  func.func @transform_2(%arg0: i32, %arg1: i32) -> (i32, i32) {
    %c0_i32 = arith.constant 0 : i32
    %c0_i32_0 = arith.constant 0 : i32
    %c0_i32_1 = arith.constant 0 : i32
    return %c0_i32, %c0_i32_0 : i32, i32
  }
  func.func @transform_3(%arg0: i32, %arg1: i32) -> (i32, i32) {
    %c0_i32 = arith.constant 0 : i32
    %c0_i32_0 = arith.constant 0 : i32
    %c0_i32_1 = arith.constant 0 : i32
    return %c0_i32, %c0_i32_0 : i32, i32
  }
  func.func @transform_4(%arg0: i32, %arg1: i32) -> (i32, i32) {
    %c0_i32 = arith.constant 0 : i32
    %c0_i32_0 = arith.constant 0 : i32
    return %arg0, %c0_i32 : i32, i32
  }
}

</mosaic_0001>

<llo_original>
// kernel: dl_forward.1
$region0: #{dl_forward.1}
  #allocation0 [shape = 'u32[]', space=smem, size = 0x4, offset = 0x4, fixed_abs, tag = 'smem constant byte address 0x4 - core index']
  #allocation1 [shape = 'u32[144,128]{1,0:T(1,128)}', space=vmem, size = 0x12000, scoped, tag = 'internal scratch']
  #allocation2 [shape = 'f32[8,128]{1,0:T(8,128)}', space=vmem, size = 0x1000, scoped, tag = 'scratch operand']
  %s0 = inlined_call_operand.vmem [shape: f32[8,128], index: 0, kind: input, shape index: {}]
  %s1 = inlined_call_operand.hbm [shape: f32[2,128,128], index: 1, kind: input, shape index: {}]
  %s2 = inlined_call_operand.hbm [shape: f32[128,128], index: 2, kind: input, shape index: {}]
  %s3 = inlined_call_operand.vmem [shape: f32[1,128], index: 3, kind: input, shape index: {}]
  %s4 = inlined_call_operand.hbm [shape: f32[8,128], index: 4, kind: output, shape index: {}]
  %s5 = sld [smem:[#allocation0]]
  $region69: #{dl_forward.1} parent=0
    _
  %s7 = ssub.s32 1, %s5
  %s8 = scalar_select 0, %s7, %s5
  $region1: #{dl_forward.1} parent=0
    #allocation3 [shape = 'u8[131072]{0}', space=vmem, size = 0x20000, scoped, tag = 'input window, operand 1']
    #allocation4 [shape = 's32[2]{0}', space=sflag, size = 0x8, scoped, tag = 'scoped memory for dl_forward.1']
    #allocation5 [shape = 's32[2]{0}', space=sflag, size = 0x8, scoped, tag = 'scoped memory for dl_forward.1']
    #allocation6 [shape = 'u8[65536]{0}', space=vmem, size = 0x10000, scoped, tag = 'input window, operand 2, single buffered']
    #allocation7 [shape = 's32[1]{0}', space=sflag, size = 0x4, scoped, tag = 'scoped memory for dl_forward.1']
    #allocation8 [shape = 'u8[4096]{0}', space=vmem, size = 0x1000, scoped, tag = 'output window, operand 0, single buffered']
    %9 = vsyncpa [#allocation4], 0
    %s10 = scalar_lea.sflag [#allocation4], 1
    %11 = vsyncpa %s10, 0
    %12 = vsyncpa [#allocation7], 0
    %13 = vsyncpa [#allocation5], 0
    loop: start=0, step=1, limit=4
    $region2: #{dl_forward.1} parent=1 // loop_pre_header
      _
    $region3: #{dl_forward.1} parent=1 // loop_header
      %s15 = sphi 0, %s19
      %p16 = scmp.ge.s32.totalorder %s15, 4
      %s22 = sphi 0, %s34
      %s23 = sphi 0, %s30
      %s24 = sphi 0, %s22
      %s25 = sphi 0, %s23
      %s26 = sphi 0, %s24
      %s27 = sphi 0, %s25
      %s37 = sphi 0, %s39
      %s40 = sphi 0, %s37
      %s41 = sphi 0, %s40
      %s57 = sphi 0, %s41
      %s63 = sphi 0, %s65
      %s66 = sphi 0, %s63
      %s67 = sphi 0, %s66
      %s83 = sphi 0, %s67
      %s87 = sphi 0, %s87
      %s89 = sphi 0, %s87
      %s90 = sphi 0, %s89
      %s104 = sphi 0, %s90
      %s108 = sphi 0, %s108
      %s110 = sphi 0, %s108
      %s111 = sphi 0, %s110
      %s125 = sphi 0, %s111
      %s131 = sphi 0, %s133
      %s134 = sphi 0, %s131
      %s135 = sphi 0, %s134
      %s151 = sphi 0, %s135
    $region4: #{dl_forward.1} parent=1 // loop_header_branch
      %18 = sbr.rel (%p16) target = $region8
    $region5: #{dl_forward.1} parent=1 // loop_body
      %s20 = ssub.s32 %s15, 1
      %s21 = ssub.s32 %s15, 2
      %s28 = sadd.s32 1, %s23
      %p29 = scmp.ge.s32.totalorder %s28, 2
      %s30 = scalar_select %p29, 0, %s28
      %s31 = sadd.s32 1, %s22
      %s32 = scalar_select %p29, %s31, %s22
      %p33 = scmp.ge.s32.totalorder %s32, 1
      %s34 = scalar_select %p33, 0, %s32
      %s35 = ssub.s32 %s22, %s34
      %p36 = scmp.eq.s32.totalorder %s35, 0
      %s38 = sadd.s32 %s37, 1
      %s39 = scalar_select %p36, %s37, %s38
      %p42 = pneg %p36
      %p43 = scmp.eq.s32.totalorder %s15, 1
      %p44 = por %p42, %p43
      %p45 = scmp.ne.s32.totalorder %s37, %s40
      %p46 = scmp.eq.s32.totalorder %s15, 0
      %p47 = por %p45, %p46
      %p48 = scmp.ne.s32.totalorder %s37, %s40
      %p49 = scmp.eq.s32.totalorder %s20, 1
      %p50 = por %p48, %p49
      %p51 = scmp.ne.s32.totalorder %s40, %s41
      %p52 = scmp.eq.s32.totalorder %s20, 0
      %p53 = por %p51, %p52
      %p54 = scmp.ne.s32.totalorder %s40, %s41
      %p55 = scmp.eq.s32.totalorder %s21, 1
      %p56 = por %p54, %p55
      %p58 = scmp.ne.s32.totalorder %s41, %s57
      %p59 = scmp.eq.s32.totalorder %s21, 0
      %p60 = por %p58, %p59
      %s61 = ssub.s32 %s23, %s30
      %p62 = scmp.eq.s32.totalorder %s61, 0
      %s64 = sadd.s32 %s63, 1
      %s65 = scalar_select %p62, %s63, %s64
      %p68 = pneg %p62
      %p69 = scmp.eq.s32.totalorder %s15, 1
      %p70 = por %p68, %p69
      %p71 = scmp.ne.s32.totalorder %s63, %s66
      %p72 = scmp.eq.s32.totalorder %s15, 0
      %p73 = por %p71, %p72
      %p74 = scmp.ne.s32.totalorder %s63, %s66
      %p75 = scmp.eq.s32.totalorder %s20, 1
      %p76 = por %p74, %p75
      %p77 = scmp.ne.s32.totalorder %s66, %s67
      %p78 = scmp.eq.s32.totalorder %s20, 0
      %p79 = por %p77, %p78
      %p80 = scmp.ne.s32.totalorder %s66, %s67
      %p81 = scmp.eq.s32.totalorder %s21, 1
      %p82 = por %p80, %p81
      %p84 = scmp.ne.s32.totalorder %s67, %s83
      %p85 = scmp.eq.s32.totalorder %s21, 0
      %p86 = por %p84, %p85
      %s88 = sadd.s32 %s87, 1
      %p91 = scmp.eq.s32.totalorder %s15, 1
      %p92 = scmp.ne.s32.totalorder %s87, %s89
      %p93 = scmp.eq.s32.totalorder %s15, 0
      %p94 = por %p92, %p93
      %p95 = scmp.ne.s32.totalorder %s87, %s89
      %p96 = scmp.eq.s32.totalorder %s20, 1
      %p97 = por %p95, %p96
      %p98 = scmp.ne.s32.totalorder %s89, %s90
      %p99 = scmp.eq.s32.totalorder %s20, 0
      %p100 = por %p98, %p99
      %p101 = scmp.ne.s32.totalorder %s89, %s90
      %p102 = scmp.eq.s32.totalorder %s21, 1
      %p103 = por %p101, %p102
      %p105 = scmp.ne.s32.totalorder %s90, %s104
      %p106 = scmp.eq.s32.totalorder %s21, 0
      %p107 = por %p105, %p106
      %s109 = sadd.s32 %s108, 1
      %p112 = scmp.eq.s32.totalorder %s15, 1
      %p113 = scmp.ne.s32.totalorder %s108, %s110
      %p114 = scmp.eq.s32.totalorder %s15, 0
      %p115 = por %p113, %p114
      %p116 = scmp.ne.s32.totalorder %s108, %s110
      %p117 = scmp.eq.s32.totalorder %s20, 1
      %p118 = por %p116, %p117
      %p119 = scmp.ne.s32.totalorder %s110, %s111
      %p120 = scmp.eq.s32.totalorder %s20, 0
      %p121 = por %p119, %p120
      %p122 = scmp.ne.s32.totalorder %s110, %s111
      %p123 = scmp.eq.s32.totalorder %s21, 1
      %p124 = por %p122, %p123
      %p126 = scmp.ne.s32.totalorder %s111, %s125
      %p127 = scmp.eq.s32.totalorder %s21, 0
      %p128 = por %p126, %p127
      %s129 = ssub.s32 %s22, %s34
      %p130 = scmp.eq.s32.totalorder %s129, 0
      %s132 = sadd.s32 %s131, 1
      %s133 = scalar_select %p130, %s131, %s132
      %p136 = pneg %p130
      %p137 = scmp.eq.s32.totalorder %s15, 1
      %p138 = por %p136, %p137
      %p139 = scmp.ne.s32.totalorder %s131, %s134
      %p140 = scmp.eq.s32.totalorder %s15, 0
      %p141 = por %p139, %p140
      %p142 = scmp.ne.s32.totalorder %s131, %s134
      %p143 = scmp.eq.s32.totalorder %s20, 1
      %p144 = por %p142, %p143
      %p145 = scmp.ne.s32.totalorder %s134, %s135
      %p146 = scmp.eq.s32.totalorder %s20, 0
      %p147 = por %p145, %p146
      %p148 = scmp.ne.s32.totalorder %s134, %s135
      %p149 = scmp.eq.s32.totalorder %s21, 1
      %p150 = por %p148, %p149
      %p152 = scmp.ne.s32.totalorder %s135, %s151
      %p153 = scmp.eq.s32.totalorder %s21, 0
      %p154 = por %p152, %p153
      %p155 = scmp.le.s32.totalorder 1, %s15
      %p156 = scmp.lt.s32.totalorder %s15, 3
      %p157 = pnand %p155, %p156
      %p158 = pneg %p157
      // Predicated region
      $region9: #{dl_forward.1} parent=5 // pred_check
        _
      $region10: #{dl_forward.1} parent=5 // pred_check_branch
        %160 = sbr.rel (%p157) target = $region12
      $region11: #{dl_forward.1} parent=5 // pred_region
        %s161 = ssub.s32 %s15, 1
        // Predicated region
        $region13: #{dl_forward.1} parent=11 // pred_check
          %p162 = pneg %p53
        $region14: #{dl_forward.1} parent=11 // pred_check_branch
          %164 = sbr.rel (%p162) target = $region16
        $region15: #{dl_forward.1} parent=11 // pred_region
          %p165 = scmp.lt.s32.totalorder %s24, 0
          %s166 = scalar_select %p165, %s24, 0
          %s167 = smul.addr %s166, 8
          %s168 = scalar_lea.vmem %s0, %s167
        $region16: #{dl_forward.1} parent=11 // pred_fallthru
          _
        // Predicated region
        $region17: #{dl_forward.1} parent=11 // pred_check
          %p169 = pneg %p100
        $region18: #{dl_forward.1} parent=11 // pred_check_branch
          %171 = sbr.rel (%p169) target = $region20
        $region19: #{dl_forward.1} parent=11 // pred_region
          %s173 = ssub.s32 2048, 2048
          %174 = vsyncadd [#allocation7], %s173
          %s175 = sshll.u32 [#allocation6], 4
          %s176 = int_to_ptr.vmem [resolvable:$true] %s175
          %181 = dma.hbm_to_vmem [thread:$0]  %s2, 2048, %s176, [#allocation7], 128, 128, 8
        $region20: #{dl_forward.1} parent=11 // pred_fallthru
          _
        // Predicated region
        $region21: #{dl_forward.1} parent=11 // pred_check
          %p182 = pneg %p121
        $region22: #{dl_forward.1} parent=11 // pred_check_branch
          %184 = sbr.rel (%p182) target = $region24
        $region23: #{dl_forward.1} parent=11 // pred_region
          _
        $region24: #{dl_forward.1} parent=11 // pred_fallthru
          _
      $region12: #{dl_forward.1} parent=5 // pred_fallthru
        _
      %p185 = scmp.lt.s32.totalorder %s15, 2
      // Predicated region
      $region25: #{dl_forward.1} parent=5 // pred_check
        %p186 = pneg %p185
      $region26: #{dl_forward.1} parent=5 // pred_check_branch
        %188 = sbr.rel (%p186) target = $region28
      $region27: #{dl_forward.1} parent=5 // pred_region
        // Predicated region
        $region29: #{dl_forward.1} parent=27 // pred_check
          %p189 = pneg %p73
        $region30: #{dl_forward.1} parent=27 // pred_check_branch
          %191 = sbr.rel (%p189) target = $region32
        $region31: #{dl_forward.1} parent=27 // pred_region
          %s192 = sand.u32 %s63, 1
          %s193 = scalar_lea.sflag [#allocation4], %s192
          %s194 = sand.u32 %s63, 1
          %s195 = smul.addr %s194, 128
          %s196 = scalar_lea.vmem [#allocation3], %s195
          %s198 = ssub.s32 2048, 2048
          %199 = vsyncadd %s193, %s198
          %s200 = smul.addr %s23, 16
          %s201 = smul.addr %s200, 128
          %s202 = scalar_lea.hbm %s1, %s201
          %s203 = sshll.u32 %s196, 4
          %s204 = int_to_ptr.vmem [resolvable:$true] %s203
          %209 = dma.hbm_to_vmem [thread:$0]  %s202, 2048, %s204, %s193, 128, 128, 8
        $region32: #{dl_forward.1} parent=27 // pred_fallthru
          _
      $region28: #{dl_forward.1} parent=5 // pred_fallthru
        _
      %p210 = scmp.le.s32.totalorder 1, %s15
      %p211 = scmp.lt.s32.totalorder %s15, 3
      %p212 = pnand %p210, %p211
      %p213 = pneg %p212
      // Predicated region
      $region33: #{dl_forward.1} parent=5 // pred_check
        _
      $region34: #{dl_forward.1} parent=5 // pred_check_branch
        %215 = sbr.rel (%p212) target = $region36
      $region35: #{dl_forward.1} parent=5 // pred_region
        %s216 = ssub.s32 %s15, 1
        %s217 = sand.u32 %s66, 1
        %s218 = scalar_lea.sflag [#allocation4], %s217
        %s219 = sand.u32 %s66, 1
        %s220 = smul.addr %s219, 128
        %s221 = scalar_lea.vmem [#allocation3], %s220
        // Predicated region
        $region37: #{dl_forward.1} parent=35 // pred_check
          %p222 = pneg %p79
        $region38: #{dl_forward.1} parent=35 // pred_check_branch
          %224 = sbr.rel (%p222) target = $region40
        $region39: #{dl_forward.1} parent=35 // pred_region
          %225 = dma.done %s218, 2048
        $region40: #{dl_forward.1} parent=35 // pred_fallthru
          _
        // Predicated region
        $region41: #{dl_forward.1} parent=35 // pred_check
          %p226 = pneg %p100
        $region42: #{dl_forward.1} parent=35 // pred_check_branch
          %228 = sbr.rel (%p226) target = $region44
        $region43: #{dl_forward.1} parent=35 // pred_region
          %229 = dma.done [#allocation7], 2048
        $region44: #{dl_forward.1} parent=35 // pred_fallthru
          _
        %p230 = scmp.lt.s32.totalorder %s24, 0
        %s231 = scalar_select %p230, %s24, 0
        %s232 = smul.addr %s231, 8
        %s233 = scalar_lea.vmem %s0, %s232
        %p234 = pneg %p53
        %p235 = pneg %p50
        %s236 = sand.u32 %s66, 1
        %s237 = scalar_lea.sflag [#allocation4], %s236
        %s238 = sand.u32 %s66, 1
        %s239 = smul.addr %s238, 128
        %s240 = scalar_lea.vmem [#allocation3], %s239
        %p241 = pneg %p79
        %p242 = pneg %p76
        %p243 = pneg %p100
        %p244 = pneg %p97
        %p245 = pneg %p121
        %p246 = pneg %p118
        %p247 = pneg %p147
        %p248 = pneg %p144
        %p249 = scmp.lt.s32.totalorder %s24, 0
        %s250 = scalar_select %p249, %s24, 0
        %s251 = smul.addr %s250, 8
        %s252 = scalar_lea.vmem %s0, %s251
        %p253 = scmp.eq.s32.totalorder %s25, 0
        // Predicated region
        $region45: #{dl_forward.1} parent=35 // pred_check
          %p254 = pneg %p253
        $region46: #{dl_forward.1} parent=35 // pred_check_branch
          %256 = sbr.rel (%p254) target = $region48
        $region47: #{dl_forward.1} parent=35 // pred_region
          %v257 = vld [vmem:[%s252] sm:$0xff]
          %v258 = vld [vmem:[%s221] sm:$0xff]
          %v259 = vld [vmem:[%s221 + $0x8] sm:$0xff]
          %v260 = vld [vmem:[%s221 + $0x10] sm:$0xff]
          %v261 = vld [vmem:[%s221 + $0x18] sm:$0xff]
          %v262 = vld [vmem:[%s221 + $0x20] sm:$0xff]
          %v263 = vld [vmem:[%s221 + $0x28] sm:$0xff]
          %v264 = vld [vmem:[%s221 + $0x30] sm:$0xff]
          %v265 = vld [vmem:[%s221 + $0x38] sm:$0xff]
          %v266 = vld [vmem:[%s221 + $0x40] sm:$0xff]
          %v267 = vld [vmem:[%s221 + $0x48] sm:$0xff]
          %v268 = vld [vmem:[%s221 + $0x50] sm:$0xff]
          %v269 = vld [vmem:[%s221 + $0x58] sm:$0xff]
          %v270 = vld [vmem:[%s221 + $0x60] sm:$0xff]
          %v271 = vld [vmem:[%s221 + $0x68] sm:$0xff]
          %v272 = vld [vmem:[%s221 + $0x70] sm:$0xff]
          %v273 = vld [vmem:[%s221 + $0x78] sm:$0xff]
          %274 = vmatprep.subr.mxu0 0.0
          %275 = vmatpush1.msra.mxu0 %v258
          %276 = vmatprep.subr.mxu0 0.0
          %277 = vmatpush1.msra.mxu0 %v259
          %278 = vmatprep.subr.mxu0 0.0
          %279 = vmatpush1.msra.mxu0 %v260
          %280 = vmatprep.subr.mxu0 0.0
          %281 = vmatpush1.msra.mxu0 %v261
          %282 = vmatprep.subr.mxu0 0.0
          %283 = vmatpush1.msra.mxu0 %v262
          %284 = vmatprep.subr.mxu0 0.0
          %285 = vmatpush1.msra.mxu0 %v263
          %286 = vmatprep.subr.mxu0 0.0
          %287 = vmatpush1.msra.mxu0 %v264
          %288 = vmatprep.subr.mxu0 0.0
          %289 = vmatpush1.msra.mxu0 %v265
          %290 = vmatprep.subr.mxu0 0.0
          %291 = vmatpush1.msra.mxu0 %v266
          %292 = vmatprep.subr.mxu0 0.0
          %293 = vmatpush1.msra.mxu0 %v267
          %294 = vmatprep.subr.mxu0 0.0
          %295 = vmatpush1.msra.mxu0 %v268
          %296 = vmatprep.subr.mxu0 0.0
          %297 = vmatpush1.msra.mxu0 %v269
          %298 = vmatprep.subr.mxu0 0.0
          %299 = vmatpush1.msra.mxu0 %v270
          %300 = vmatprep.subr.mxu0 0.0
          %301 = vmatpush1.msra.mxu0 %v271
          %302 = vmatprep.subr.mxu0 0.0
          %303 = vmatpush1.msra.mxu0 %v272
          %304 = vmatprep.subr.mxu0 0.0
          %305 = vmatpush1.msra.mxu0 %v273
          %306 = vmatprep.subr.mxu0 0.0
          %307 = vmatpush1.msra.mxu0 0.0
          %308 = vmatprep.subr.mxu0 0.0
          %309 = vmatpush1.msra.mxu0 0.0
          %310 = vmatprep.subr.mxu0 0.0
          %311 = vmatpush1.msra.mxu0 0.0
          %312 = vmatprep.subr.mxu0 0.0
          %313 = vmatpush1.msra.mxu0 0.0
          %314 = vmatprep.subr.mxu0 0.0
          %315 = vmatpush1.msra.mxu0 0.0
          %316 = vmatprep.subr.mxu0 0.0
          %317 = vmatpush1.msra.mxu0 0.0
          %318 = vmatprep.subr.mxu0 0.0
          %319 = vmatpush1.msra.mxu0 0.0
          %320 = vmatprep.subr.mxu0 0.0
          %321 = vmatpush1.msra.mxu0 0.0
          %322 = vmatprep.subr.mxu0 0.0
          %323 = vmatpush1.msra.mxu0 0.0
          %324 = vmatprep.subr.mxu0 0.0
          %325 = vmatpush1.msra.mxu0 0.0
          %326 = vmatprep.subr.mxu0 0.0
          %327 = vmatpush1.msra.mxu0 0.0
          %328 = vmatprep.subr.mxu0 0.0
          %329 = vmatpush1.msra.mxu0 0.0
          %330 = vmatprep.subr.mxu0 0.0
          %331 = vmatpush1.msra.mxu0 0.0
          %332 = vmatprep.subr.mxu0 0.0
          %333 = vmatpush1.msra.mxu0 0.0
          %334 = vmatprep.subr.mxu0 0.0
          %335 = vmatpush1.msra.mxu0 0.0
          %336 = vmatprep.subr.mxu0 0.0
          %337 = vmatpush1.msra.mxu0 0.0
          %338 = vmatprep.mubr.f32.mxu0 0.0
          %339 = vmatmul.mubr.f32.gmra.mrb[0].mxu0 %v257
          %v340 = vpop.f32.mrb[0].mxu0
          %v341 = vadd.f32 0.0, %v340
          %v342 = vpop.f32.mrb[0].mxu0
          %343 = vdwg.mxu0
          %v344 = vtanh.pop %v341
          %345 = vst [vmem:[#allocation2] sm:$0xff] %v344
        $region48: #{dl_forward.1} parent=35 // pred_fallthru
          _
        %p346 = scmp.gt.s32.totalorder %s25, 0
        // Predicated region
        $region49: #{dl_forward.1} parent=35 // pred_check
          %p347 = pneg %p346
        $region50: #{dl_forward.1} parent=35 // pred_check_branch
          %349 = sbr.rel (%p347) target = $region52
        $region51: #{dl_forward.1} parent=35 // pred_region
          %v350 = vld [vmem:[#allocation2] sm:$0xff]
          %v351 = vld [vmem:[%s221] sm:$0xff]
          %v352 = vld [vmem:[%s221 + $0x8] sm:$0xff]
          %v353 = vld [vmem:[%s221 + $0x10] sm:$0xff]
          %v354 = vld [vmem:[%s221 + $0x18] sm:$0xff]
          %v355 = vld [vmem:[%s221 + $0x20] sm:$0xff]
          %v356 = vld [vmem:[%s221 + $0x28] sm:$0xff]
          %v357 = vld [vmem:[%s221 + $0x30] sm:$0xff]
          %v358 = vld [vmem:[%s221 + $0x38] sm:$0xff]
          %v359 = vld [vmem:[%s221 + $0x40] sm:$0xff]
          %v360 = vld [vmem:[%s221 + $0x48] sm:$0xff]
          %v361 = vld [vmem:[%s221 + $0x50] sm:$0xff]
          %v362 = vld [vmem:[%s221 + $0x58] sm:$0xff]
          %v363 = vld [vmem:[%s221 + $0x60] sm:$0xff]
          %v364 = vld [vmem:[%s221 + $0x68] sm:$0xff]
          %v365 = vld [vmem:[%s221 + $0x70] sm:$0xff]
          %v366 = vld [vmem:[%s221 + $0x78] sm:$0xff]
          %367 = vmatprep.subr.mxu0 0.0
          %368 = vmatpush1.msra.mxu0 %v351
          %369 = vmatprep.subr.mxu0 0.0
          %370 = vmatpush1.msra.mxu0 %v352
          %371 = vmatprep.subr.mxu0 0.0
          %372 = vmatpush1.msra.mxu0 %v353
          %373 = vmatprep.subr.mxu0 0.0
          %374 = vmatpush1.msra.mxu0 %v354
          %375 = vmatprep.subr.mxu0 0.0
          %376 = vmatpush1.msra.mxu0 %v355
          %377 = vmatprep.subr.mxu0 0.0
          %378 = vmatpush1.msra.mxu0 %v356
          %379 = vmatprep.subr.mxu0 0.0
          %380 = vmatpush1.msra.mxu0 %v357
          %381 = vmatprep.subr.mxu0 0.0
          %382 = vmatpush1.msra.mxu0 %v358
          %383 = vmatprep.subr.mxu0 0.0
          %384 = vmatpush1.msra.mxu0 %v359
          %385 = vmatprep.subr.mxu0 0.0
          %386 = vmatpush1.msra.mxu0 %v360
          %387 = vmatprep.subr.mxu0 0.0
          %388 = vmatpush1.msra.mxu0 %v361
          %389 = vmatprep.subr.mxu0 0.0
          %390 = vmatpush1.msra.mxu0 %v362
          %391 = vmatprep.subr.mxu0 0.0
          %392 = vmatpush1.msra.mxu0 %v363
          %393 = vmatprep.subr.mxu0 0.0
          %394 = vmatpush1.msra.mxu0 %v364
          %395 = vmatprep.subr.mxu0 0.0
          %396 = vmatpush1.msra.mxu0 %v365
          %397 = vmatprep.subr.mxu0 0.0
          %398 = vmatpush1.msra.mxu0 %v366
          %399 = vmatprep.subr.mxu0 0.0
          %400 = vmatpush1.msra.mxu0 0.0
          %401 = vmatprep.subr.mxu0 0.0
          %402 = vmatpush1.msra.mxu0 0.0
          %403 = vmatprep.subr.mxu0 0.0
          %404 = vmatpush1.msra.mxu0 0.0
          %405 = vmatprep.subr.mxu0 0.0
          %406 = vmatpush1.msra.mxu0 0.0
          %407 = vmatprep.subr.mxu0 0.0
          %408 = vmatpush1.msra.mxu0 0.0
          %409 = vmatprep.subr.mxu0 0.0
          %410 = vmatpush1.msra.mxu0 0.0
          %411 = vmatprep.subr.mxu0 0.0
          %412 = vmatpush1.msra.mxu0 0.0
          %413 = vmatprep.subr.mxu0 0.0
          %414 = vmatpush1.msra.mxu0 0.0
          %415 = vmatprep.subr.mxu0 0.0
          %416 = vmatpush1.msra.mxu0 0.0
          %417 = vmatprep.subr.mxu0 0.0
          %418 = vmatpush1.msra.mxu0 0.0
          %419 = vmatprep.subr.mxu0 0.0
          %420 = vmatpush1.msra.mxu0 0.0
          %421 = vmatprep.subr.mxu0 0.0
          %422 = vmatpush1.msra.mxu0 0.0
          %423 = vmatprep.subr.mxu0 0.0
          %424 = vmatpush1.msra.mxu0 0.0
          %425 = vmatprep.subr.mxu0 0.0
          %426 = vmatpush1.msra.mxu0 0.0
          %427 = vmatprep.subr.mxu0 0.0
          %428 = vmatpush1.msra.mxu0 0.0
          %429 = vmatprep.subr.mxu0 0.0
          %430 = vmatpush1.msra.mxu0 0.0
          %431 = vmatprep.mubr.f32.mxu0 0.0
          %432 = vmatmul.mubr.f32.gmra.mrb[0].mxu0 %v350
          %v433 = vpop.f32.mrb[0].mxu0
          %v434 = vadd.f32 0.0, %v433
          %v435 = vpop.f32.mrb[0].mxu0
          %436 = vdwg.mxu0
          %v437 = vtanh.pop %v434
          %438 = vst [vmem:[#allocation2] sm:$0xff] %v437
        $region52: #{dl_forward.1} parent=35 // pred_fallthru
          _
        %p439 = scmp.eq.s32.totalorder %s25, 1
        // Predicated region
        $region53: #{dl_forward.1} parent=35 // pred_check
          %p440 = pneg %p439
        $region54: #{dl_forward.1} parent=35 // pred_check_branch
          %442 = sbr.rel (%p440) target = $region56
        $region55: #{dl_forward.1} parent=35 // pred_region
          %v443 = vld [vmem:[#allocation2] sm:$0xff]
          %v444 = vld [vmem:[#allocation6] sm:$0xff]
          %v445 = vld [vmem:[#allocation6 + $0x8] sm:$0xff]
          %v446 = vld [vmem:[#allocation6 + $0x10] sm:$0xff]
          %v447 = vld [vmem:[#allocation6 + $0x18] sm:$0xff]
          %v448 = vld [vmem:[#allocation6 + $0x20] sm:$0xff]
          %v449 = vld [vmem:[#allocation6 + $0x28] sm:$0xff]
          %v450 = vld [vmem:[#allocation6 + $0x30] sm:$0xff]
          %v451 = vld [vmem:[#allocation6 + $0x38] sm:$0xff]
          %v452 = vld [vmem:[#allocation6 + $0x40] sm:$0xff]
          %v453 = vld [vmem:[#allocation6 + $0x48] sm:$0xff]
          %v454 = vld [vmem:[#allocation6 + $0x50] sm:$0xff]
          %v455 = vld [vmem:[#allocation6 + $0x58] sm:$0xff]
          %v456 = vld [vmem:[#allocation6 + $0x60] sm:$0xff]
          %v457 = vld [vmem:[#allocation6 + $0x68] sm:$0xff]
          %v458 = vld [vmem:[#allocation6 + $0x70] sm:$0xff]
          %v459 = vld [vmem:[#allocation6 + $0x78] sm:$0xff]
          %v460 = vld [vmem:[%s3] sm:$0x1]
          %v462 = vlaneseq
          %v463 = vshrl.u32 %v462, 7
          %v464 = vsub.s32 0, %v463
          %v465 = vrot.slane %v460, %v464
          %467 = vmatprep.subr.mxu0 0.0
          %468 = vmatpush1.msra.mxu0 %v444
          %469 = vmatprep.subr.mxu0 0.0
          %470 = vmatpush1.msra.mxu0 %v445
          %471 = vmatprep.subr.mxu0 0.0
          %472 = vmatpush1.msra.mxu0 %v446
          %473 = vmatprep.subr.mxu0 0.0
          %474 = vmatpush1.msra.mxu0 %v447
          %475 = vmatprep.subr.mxu0 0.0
          %476 = vmatpush1.msra.mxu0 %v448
          %477 = vmatprep.subr.mxu0 0.0
          %478 = vmatpush1.msra.mxu0 %v449
          %479 = vmatprep.subr.mxu0 0.0
          %480 = vmatpush1.msra.mxu0 %v450
          %481 = vmatprep.subr.mxu0 0.0
          %482 = vmatpush1.msra.mxu0 %v451
          %483 = vmatprep.subr.mxu0 0.0
          %484 = vmatpush1.msra.mxu0 %v452
          %485 = vmatprep.subr.mxu0 0.0
          %486 = vmatpush1.msra.mxu0 %v453
          %487 = vmatprep.subr.mxu0 0.0
          %488 = vmatpush1.msra.mxu0 %v454
          %489 = vmatprep.subr.mxu0 0.0
          %490 = vmatpush1.msra.mxu0 %v455
          %491 = vmatprep.subr.mxu0 0.0
          %492 = vmatpush1.msra.mxu0 %v456
          %493 = vmatprep.subr.mxu0 0.0
          %494 = vmatpush1.msra.mxu0 %v457
          %495 = vmatprep.subr.mxu0 0.0
          %496 = vmatpush1.msra.mxu0 %v458
          %497 = vmatprep.subr.mxu0 0.0
          %498 = vmatpush1.msra.mxu0 %v459
          %499 = vmatprep.subr.mxu0 0.0
          %500 = vmatpush1.msra.mxu0 0.0
          %501 = vmatprep.subr.mxu0 0.0
          %502 = vmatpush1.msra.mxu0 0.0
          %503 = vmatprep.subr.mxu0 0.0
          %504 = vmatpush1.msra.mxu0 0.0
          %505 = vmatprep.subr.mxu0 0.0
          %506 = vmatpush1.msra.mxu0 0.0
          %507 = vmatprep.subr.mxu0 0.0
          %508 = vmatpush1.msra.mxu0 0.0
          %509 = vmatprep.subr.mxu0 0.0
          %510 = vmatpush1.msra.mxu0 0.0
          %511 = vmatprep.subr.mxu0 0.0
          %512 = vmatpush1.msra.mxu0 0.0
          %513 = vmatprep.subr.mxu0 0.0
          %514 = vmatpush1.msra.mxu0 0.0
          %515 = vmatprep.subr.mxu0 0.0
          %516 = vmatpush1.msra.mxu0 0.0
          %517 = vmatprep.subr.mxu0 0.0
          %518 = vmatpush1.msra.mxu0 0.0
          %519 = vmatprep.subr.mxu0 0.0
          %520 = vmatpush1.msra.mxu0 0.0
          %521 = vmatprep.subr.mxu0 0.0
          %522 = vmatpush1.msra.mxu0 0.0
          %523 = vmatprep.subr.mxu0 0.0
          %524 = vmatpush1.msra.mxu0 0.0
          %525 = vmatprep.subr.mxu0 0.0
          %526 = vmatpush1.msra.mxu0 0.0
          %527 = vmatprep.subr.mxu0 0.0
          %528 = vmatpush1.msra.mxu0 0.0
          %529 = vmatprep.subr.mxu0 0.0
          %530 = vmatpush1.msra.mxu0 0.0
          %531 = vmatprep.mubr.f32.mxu0 0.0
          %532 = vmatmul.mubr.f32.gmra.mrb[0].mxu0 %v443
          %v533 = vpop.f32.mrb[0].mxu0
          %v534 = vadd.f32 %v465, %v533
          %v535 = vpop.f32.mrb[0].mxu0
          %536 = vdwg.mxu0
          %537 = vst [vmem:[#allocation8] sm:$0xff] %v534
        $region56: #{dl_forward.1} parent=35 // pred_fallthru
          _
        // Predicated region
        $region57: #{dl_forward.1} parent=35 // pred_check
          %p538 = pneg %p144
        $region58: #{dl_forward.1} parent=35 // pred_check_branch
          %540 = sbr.rel (%p538) target = $region60
        $region59: #{dl_forward.1} parent=35 // pred_region
          %s542 = ssub.s32 128, 128
          %543 = vsyncadd [#allocation5], %s542
          %s544 = smul.addr %s24, 128
          %s545 = scalar_lea.hbm %s4, %s544
          %s547 = sshll.u32 [#allocation8], 4
          %s548 = int_to_ptr.vmem [resolvable:$true] %s547
          %550 = dma.vmem_to_hbm [thread:$0]  %s548, 128, %s545, [#allocation5]
        $region60: #{dl_forward.1} parent=35 // pred_fallthru
          _
        // Predicated region
        $region61: #{dl_forward.1} parent=35 // pred_check
          %p551 = pneg %p144
        $region62: #{dl_forward.1} parent=35 // pred_check_branch
          %553 = sbr.rel (%p551) target = $region64
        $region63: #{dl_forward.1} parent=35 // pred_region
          %554 = dma.done [#allocation5], 128
        $region64: #{dl_forward.1} parent=35 // pred_fallthru
          _
      $region36: #{dl_forward.1} parent=5 // pred_fallthru
        _
      %p555 = scmp.le.s32.totalorder 2, %s15
      // Predicated region
      $region65: #{dl_forward.1} parent=5 // pred_check
        %p556 = pneg %p555
      $region66: #{dl_forward.1} parent=5 // pred_check_branch
        %558 = sbr.rel (%p556) target = $region68
      $region67: #{dl_forward.1} parent=5 // pred_region
        %s559 = ssub.s32 %s15, 2
      $region68: #{dl_forward.1} parent=5 // pred_fallthru
        _
    $region6: #{dl_forward.1} parent=1 // loop_footer
      %s19 = sadd.s32 1, %s15
    $region7: #{dl_forward.1} parent=1 // loop_footer_branch
      %14 = sbr.rel target = $region3
    $region8: #{dl_forward.1} parent=1 // loop_exit
      _
    %560 = vsyncpa [#allocation4], 1
    %s561 = scalar_lea.sflag [#allocation4], 1
    %562 = vsyncpa %s561, 1
    %563 = vsyncpa [#allocation7], 1
    %564 = vsyncpa [#allocation5], 1
    %s565 = scalar_lea.sflag [#allocation5], 1
    %566 = vsyncpa %s565, 1

</llo_original>
